<compile_context>
chip_gen: v7x
topology: tpu7x:2x2x1
jax: 0.10.0
libtpu: 0.0.40
codegen_flags: <defaults>
</compile_context>

<pallas_src>
import functools

import jax
import jax.numpy as jnp
from jax.experimental import pallas as pl
from jax.experimental.pallas import tpu as pltpu


def _round_up(a: int, b: int) -> int:
    return ((a + b - 1) // b) * b


def _vmem_capacity_bytes() -> int:
    """Physical VMEM per TensorCore (128 MiB v5e/v6e, 64 MiB v7x)."""
    try:
        cap = int(pltpu.get_tpu_info().vmem_capacity_bytes)
        if cap > 0:
            return cap
    except Exception:
        pass
    try:
        if "v7" in jax.devices()[0].device_kind.lower():
            return 64 << 20
    except Exception:
        pass
    return 128 << 20


def _tensorcore_count() -> int:
    """TensorCores addressable by one pallas_call: 2 on v7x, else 1."""
    try:
        if "v7" in jax.devices()[0].device_kind.lower():
            return 2
    except Exception:
        pass
    return 1


def _focal_loss_kernel(x_ref, y_ref, alpha_ref, loss_ref, cnt_ref,
                       loss_acc, cnt_acc, *, gamma: float, ignore_index: int,
                       tile_s: int, tiles_per_split: int, s_valid: int):
    p = pl.program_id(0)
    b = pl.program_id(1)
    i = pl.program_id(2)

    # Zero the per-core lane-wide accumulators at the start of this core's work.
    @pl.when((b == 0) & (i == 0))
    def _():
        loss_acc[...] = jnp.zeros_like(loss_acc)
        cnt_acc[...] = jnp.zeros_like(cnt_acc)

    # Skip fully-padded spatial tail tiles (pure perf win: padded labels are
    # ignore_index so they would contribute zero anyway).
    tile_start = (p * tiles_per_split + i) * tile_s

    @pl.when(tile_start < s_valid)
    def _():
        x = x_ref[0].astype(jnp.float32)              # (C, T): classes on sublanes
        y = y_ref[0]                                  # (1, T) int32 labels
        alpha = alpha_ref[...].astype(jnp.float32)    # (C, 1) per-class weights
        c, t = x.shape

        # Softmax pieces over the class (sublane) axis; log_p is NOT materialized.
        m = jnp.max(x, axis=0, keepdims=True)                 # (1, T)  XLU
        z = x - m                                             # (C, T)  VPU
        exp_z = jnp.exp(z)                                    # (C, T)  EUP
        sum_exp = jnp.sum(exp_z, axis=0, keepdims=True)       # (1, T)  XLU
        lse = jnp.log(sum_exp)                                # (1, T)

        # One-hot gather of the label class.  Labels that match no class id
        # (ignore_index, spatial padding, or out-of-range ids) give an all-zero
        # column and contribute exactly zero loss.  NOTE: out-of-range labels
        # that are not ignore_index still count toward the 'mean' denominator
        # (PyTorch would error on such labels).
        cls = jax.lax.broadcasted_iota(jnp.int32, (c, t), 0)
        onehot = (cls == y).astype(jnp.float32)               # (C, T)

        z_y = jnp.sum(z * onehot, axis=0, keepdims=True)          # (1, T)
        # alpha broadcast (C,1)->(C,T) happens exactly once per tile here.
        alpha_y = jnp.sum(alpha * onehot, axis=0, keepdims=True)  # (1, T)
        pt_num = jnp.sum(exp_z * onehot, axis=0, keepdims=True)   # (1, T)

        log_pt = z_y - lse                                     # (1, T)
        # Exact division (not approx reciprocal) to stay bit-close to the
        # PyTorch exp(log_pt) reference.
        pt = pt_num / sum_exp

        mask = (y != ignore_index).astype(jnp.float32)         # (1, T)

        ce = -alpha_y * log_pt                # NLLLoss(weight=alpha, 'none')
        one_minus_pt = jnp.maximum(1.0 - pt, 0.0)

        # Integer gamma (the common gamma=2 default): pure VPU multiplies, no
        # extra EUP transcendentals and no log(0) fragility.
        if float(gamma) == int(gamma) and 0 <= int(gamma) <= 12:
            gi = int(gamma)
            if gi == 0:
                focal = jnp.ones_like(one_minus_pt)
            else:
                focal = one_minus_pt
                for _ in range(gi - 1):
                    focal = focal * one_minus_pt
        else:
            focal = jnp.power(one_minus_pt, gamma)

        # Lane-wide partial sums (VPU adds only); no per-step cross-lane reduce.
        loss_acc[...] += focal * ce * mask
        cnt_acc[...] += mask

    # Single cross-lane reduction to the (1, 1) outputs on the last step.
    @pl.when((b == pl.num_programs(1) - 1) & (i == pl.num_programs(2) - 1))
    def _():
        loss_ref[...] = jnp.sum(loss_acc[...], keepdims=True)
        cnt_ref[...] = jnp.sum(cnt_acc[...], keepdims=True)


def focal_loss(x, y, alpha=None, gamma=2.0, reduction="mean",
               ignore_index=-100, max_spatial_tile=32768):
    """Focal loss matching the PyTorch module's forward().

    x: (B, C) or (B, C, d1, ..., dK) raw logits.
    y: (B,)   or (B, d1, ..., dK)    integer class labels.
    """
    if reduction not in ("mean", "sum", "none"):
        raise ValueError('Reduction must be one of: "mean", "sum", "none".')
    if reduction == "none":
        # TODO(synk): reduction='none' in PyTorch returns only the unignored rows
        # (dynamic shape); not representable as a static-shape kernel output.
        raise NotImplementedError("reduction='none' not supported")

    if x.ndim > 2:
        # (B, C, d1..dK) -> (B, C, S): a free reshape; classes stay on the small
        # sublane axis, spatial positions go on the lane axis. No HBM transpose.
        b_dim, c = x.shape[0], x.shape[1]
        x3 = x.reshape(b_dim, c, -1)
        y3 = y.reshape(b_dim, 1, -1).astype(jnp.int32)
    else:
        # (B, C): transpose once so lanes stay dense even for small C.
        b_dim, c = 1, x.shape[1]
        x3 = x.T[None, :, :]
        y3 = y.reshape(1, 1, -1).astype(jnp.int32)
    s = x3.shape[-1]

    if alpha is None:
        alpha = jnp.ones((c,), jnp.float32)
    alpha2 = jnp.asarray(alpha, jnp.float32).reshape(c, 1)

    # --- Generation-aware VMEM budgeting -------------------------------------
    vmem_cap = _vmem_capacity_bytes()
    if vmem_cap >= (96 << 20):        # v5e / v6e: 128 MiB physical VMEM
        tile_vmem_budget = 24 << 20
        vmem_limit = 80 << 20
    else:                             # v7x: 64 MiB physical / 32 MiB default scoped
        tile_vmem_budget = 10 << 20
        vmem_limit = 40 << 20

    # Real per-position footprint: x (double-buffered) + int32 y (double-buffered)
    # + the two f32 (1, t) accumulator scratches.
    itemsize = jnp.dtype(x3.dtype).itemsize
    bytes_per_t = 2 * c * itemsize + 2 * 4 + 2 * 4
    t_budget = max(128, (tile_vmem_budget // bytes_per_t) // 128 * 128)

    # Spatial tile: lane-aligned (multiple of 128), as large as possible.
    t = max(128, min(max_spatial_tile, _round_up(s, 128), t_budget))

    n_tiles = -(-s // t)
    # Leading "parallel" axis splits spatial tiles across both TensorCores, but
    # only on 2-TC parts (v7x); single-TC v5e/v6e keep a single split so they
    # never pay extra padding / flush work.
    num_splits = 2 if (_tensorcore_count() >= 2 and n_tiles >= 2) else 1
    tiles_per_split = -(-n_tiles // num_splits)
    s_pad = num_splits * tiles_per_split * t

    if s_pad != s:
        # Pad only the spatial tail (original dtype preserved); padded labels
        # are ignore_index so they contribute nothing.
        x3 = jnp.pad(x3, ((0, 0), (0, 0), (0, s_pad - s)))
        y3 = jnp.pad(y3, ((0, 0), (0, 0), (0, s_pad - s)),
                     constant_values=ignore_index)

    kernel = functools.partial(
        _focal_loss_kernel, gamma=float(gamma), ignore_index=int(ignore_index),
        tile_s=t, tiles_per_split=tiles_per_split, s_valid=s)

    loss_parts, cnt_parts = pl.pallas_call(
        kernel,
        out_shape=(jax.ShapeDtypeStruct((num_splits, 1), jnp.float32),
                   jax.ShapeDtypeStruct((num_splits, 1), jnp.float32)),
        grid_spec=pltpu.PrefetchScalarGridSpec(
            num_scalar_prefetch=0,
            grid=(num_splits, b_dim, tiles_per_split),
            in_specs=[
                pl.BlockSpec((1, c, t),
                             lambda p, b, i: (b, 0, p * tiles_per_split + i)),
                pl.BlockSpec((1, 1, t),
                             lambda p, b, i: (b, 0, p * tiles_per_split + i)),
                pl.BlockSpec((c, 1), lambda p, b, i: (0, 0)),
            ],
            out_specs=(
                pl.BlockSpec((1, 1), lambda p, b, i: (p, 0)),
                pl.BlockSpec((1, 1), lambda p, b, i: (p, 0)),
            ),
            scratch_shapes=[pltpu.VMEM((1, t), jnp.float32),
                            pltpu.VMEM((1, t), jnp.float32)],
        ),
        compiler_params=pltpu.CompilerParams(
            dimension_semantics=("parallel", "arbitrary", "arbitrary"),
            vmem_limit_bytes=vmem_limit),
    )(x3, y3, alpha2)

    loss_sum = jnp.sum(loss_parts)
    count = jnp.sum(cnt_parts)

    if reduction == "mean":
        # Module filters ignored rows first, then .mean() -> divide by the
        # count of non-ignored rows (not the sum of alpha[y]).
        return jnp.where(count > 0, loss_sum / jnp.maximum(count, 1.0), 0.0)
    else:  # "sum"
        return loss_sum


def _focal_loss_ref(x, y, alpha, gamma, ignore_index):
    """Pure-JAX reference mirroring the PyTorch forward."""
    if x.ndim > 2:
        c = x.shape[1]
        perm = (0,) + tuple(range(2, x.ndim)) + (1,)
        x = jnp.transpose(x, perm).reshape(-1, c)
        y = y.reshape(-1)
    x = x.astype(jnp.float32)
    mask = y != ignore_index
    log_p = jax.nn.log_softmax(x, axis=-1)
    y_safe = jnp.where(mask, y, 0)
    log_pt = jnp.take_along_axis(log_p, y_safe[:, None], axis=-1)[:, 0]
    ce = -alpha[y_safe] * log_pt
    pt = jnp.exp(log_pt)
    loss = ((1.0 - pt) ** gamma) * ce * mask.astype(jnp.float32)
    cnt = jnp.sum(mask.astype(jnp.float32))
    return jnp.where(cnt > 0, jnp.sum(loss) / jnp.maximum(cnt, 1.0), 0.0)


if __name__ == "__main__":
    key = jax.random.PRNGKey(0)
    kx, ky, km, k2x, k2y = jax.random.split(key, 5)

    B, C, H, W = 2, 4, 16, 16
    x = jax.random.normal(kx, (B, C, H, W), jnp.float32)
    y = jax.random.randint(ky, (B, H, W), 0, C, jnp.int32)
    # Sprinkle some ignore_index labels to exercise the mask.
    ignore = jax.random.bernoulli(km, 0.1, (B, H, W))
    y = jnp.where(ignore, -100, y)

    alpha = jnp.linspace(0.5, 1.5, C, dtype=jnp.float32)
    gamma = 2.0

    out = focal_loss(x, y, alpha=alpha, gamma=gamma,
                     reduction="mean", ignore_index=-100)
    out = jax.block_until_ready(out)
    ref = _focal_loss_ref(x, y, alpha, gamma, -100)
    assert jnp.allclose(out, ref, rtol=1e-5, atol=1e-6), (out, ref)

    # 2-D (batch, classes) path.
    x2 = jax.random.normal(k2x, (8, C), jnp.float32)
    y2 = jax.random.randint(k2y, (8,), 0, C, jnp.int32)
    out2 = focal_loss(x2, y2, alpha=alpha, gamma=gamma,
                      reduction="mean", ignore_index=-100)
    out2 = jax.block_until_ready(out2)
    ref2 = _focal_loss_ref(x2, y2, alpha, gamma, -100)
    assert jnp.allclose(out2, ref2, rtol=1e-5, atol=1e-6), (out2, ref2)

    print("KERNEL_OK")
</pallas_src>

<mosaic_0001>
module attributes {stable_mosaic.version = 11 : i64} {
  func.func @_focal_loss_kernel(%arg0: i32, %arg1: i32, %arg2: i32, %arg3: memref<1x4x256xf32, #tpu.memory_space<vmem>>, %arg4: memref<1x1x256xi32, #tpu.memory_space<vmem>>, %arg5: memref<4x1xf32, #tpu.memory_space<vmem>>, %arg6: memref<1x1xf32, #tpu.memory_space<vmem>>, %arg7: memref<1x1xf32, #tpu.memory_space<vmem>>, %arg8: memref<1x256xf32, #tpu.memory_space<vmem>>, %arg9: memref<1x256xf32, #tpu.memory_space<vmem>>) attributes {dimension_semantics = [#tpu.dimension_semantics<parallel>, #tpu.dimension_semantics<arbitrary>, #tpu.dimension_semantics<arbitrary>], iteration_bounds = array<i64: 1, 2, 1>, scalar_prefetch = 0 : i64, scratch_operands = 2 : i64, tpu.core_type = #tpu.core_type<tc>, window_params = [{transform_indices = @transform_0, window_bounds = array<i64: 1, 4, 256>}, {transform_indices = @transform_1, window_bounds = array<i64: 1, 1, 256>}, {pipeline_mode = #tpu.pipeline_mode<synchronous>, transform_indices = @transform_2, window_bounds = array<i64: 4, 1>}, {transform_indices = @transform_3, window_bounds = array<i64: 1, 1>}, {transform_indices = @transform_4, window_bounds = array<i64: 1, 1>}]} {
    %c0_i32 = arith.constant 0 : i32
    %0 = arith.cmpi eq, %arg1, %c0_i32 : i32
    %c0_i32_0 = arith.constant 0 : i32
    %1 = arith.cmpi eq, %arg2, %c0_i32_0 : i32
    %2 = arith.andi %0, %1 : i1
    %3 = arith.extui %2 : i1 to i32
    %c0_i32_1 = arith.constant 0 : i32
    %4 = arith.cmpi ne, %3, %c0_i32_1 : i32
    scf.if %4 {
      %cst = arith.constant 0.000000e+00 : f32
      %16 = vector.broadcast %cst : f32 to vector<1x256xf32>
      %c0 = arith.constant 0 : index
      %c0_7 = arith.constant 0 : index
      %17 = vector.load %arg8[%c0, %c0_7] : memref<1x256xf32, #tpu.memory_space<vmem>>, vector<1x256xf32>
      tpu.vector_store %arg8[%c0, %c0_7], %16 {strides = array<i32>} : memref<1x256xf32, #tpu.memory_space<vmem>>, vector<1x256xf32>,
      %cst_8 = arith.constant 0.000000e+00 : f32
      %18 = vector.broadcast %cst_8 : f32 to vector<1x256xf32>
      %c0_9 = arith.constant 0 : index
      %c0_10 = arith.constant 0 : index
      %19 = vector.load %arg9[%c0_9, %c0_10] : memref<1x256xf32, #tpu.memory_space<vmem>>, vector<1x256xf32>
      tpu.vector_store %arg9[%c0_9, %c0_10], %18 {strides = array<i32>} : memref<1x256xf32, #tpu.memory_space<vmem>>, vector<1x256xf32>,
    } else {
    }
    %c1_i32 = arith.constant 1 : i32
    %5 = arith.muli %arg0, %c1_i32 : i32
    %6 = arith.addi %5, %arg2 : i32
    %c256_i32 = arith.constant 256 : i32
    %7 = arith.muli %6, %c256_i32 : i32
    %c256_i32_2 = arith.constant 256 : i32
    %8 = arith.cmpi slt, %7, %c256_i32_2 : i32
    %9 = arith.extui %8 : i1 to i32
    %c0_i32_3 = arith.constant 0 : i32
    %10 = arith.cmpi ne, %9, %c0_i32_3 : i32
    scf.if %10 {
      %c0 = arith.constant 0 : index
      %c0_7 = arith.constant 0 : index
      %c0_8 = arith.constant 0 : index
      %16 = vector.load %arg3[%c0, %c0_7, %c0_8] : memref<1x4x256xf32, #tpu.memory_space<vmem>>, vector<1x4x256xf32>
      %17 = vector.shape_cast %16 : vector<1x4x256xf32> to vector<4x256xf32>
      %c0_9 = arith.constant 0 : index
      %c0_10 = arith.constant 0 : index
      %c0_11 = arith.constant 0 : index
      %18 = vector.load %arg4[%c0_9, %c0_10, %c0_11] : memref<1x1x256xi32, #tpu.memory_space<vmem>>, vector<1x1x256xi32>
      %19 = vector.shape_cast %18 : vector<1x1x256xi32> to vector<1x256xi32>
      %c0_12 = arith.constant 0 : index
      %c0_13 = arith.constant 0 : index
      %20 = vector.load %arg5[%c0_12, %c0_13] : memref<4x1xf32, #tpu.memory_space<vmem>>, vector<4x1xf32>
      %cst = arith.constant dense<0xFF800000> : vector<256xf32>
      %21 = vector.multi_reduction <maximumf>, %17, %cst [0] : vector<4x256xf32> to vector<256xf32>
      %22 = vector.shape_cast %21 : vector<256xf32> to vector<1x256xf32>
      %23 = vector.broadcast %22 : vector<1x256xf32> to vector<4x256xf32>
      %24 = arith.subf %17, %23 : vector<4x256xf32>
      %25 = math.exp %24 : vector<4x256xf32>
      %cst_14 = arith.constant dense<0.000000e+00> : vector<256xf32>
      %26 = vector.multi_reduction <add>, %25, %cst_14 [0] : vector<4x256xf32> to vector<256xf32>
      %27 = vector.shape_cast %26 : vector<256xf32> to vector<1x256xf32>
      %28 = math.log %27 : vector<1x256xf32>
      %29 = tpu.iota {dimensions = array<i32: 0>} : vector<4x256xi32>
      %30 = vector.broadcast %19 : vector<1x256xi32> to vector<4x256xi32>
      %31 = arith.cmpi eq, %29, %30 : vector<4x256xi32>
      %32 = arith.extui %31 : vector<4x256xi1> to vector<4x256xi32>
      %33 = arith.sitofp %32 : vector<4x256xi32> to vector<4x256xf32>
      %34 = arith.mulf %24, %33 : vector<4x256xf32>
      %cst_15 = arith.constant dense<0.000000e+00> : vector<256xf32>
      %35 = vector.multi_reduction <add>, %34, %cst_15 [0] : vector<4x256xf32> to vector<256xf32>
      %36 = vector.shape_cast %35 : vector<256xf32> to vector<1x256xf32>
      %37 = vector.broadcast %20 : vector<4x1xf32> to vector<4x256xf32>
      %38 = arith.mulf %37, %33 : vector<4x256xf32>
      %cst_16 = arith.constant dense<0.000000e+00> : vector<256xf32>
      %39 = vector.multi_reduction <add>, %38, %cst_16 [0] : vector<4x256xf32> to vector<256xf32>
      %40 = vector.shape_cast %39 : vector<256xf32> to vector<1x256xf32>
      %41 = arith.mulf %25, %33 : vector<4x256xf32>
      %cst_17 = arith.constant dense<0.000000e+00> : vector<256xf32>
      %42 = vector.multi_reduction <add>, %41, %cst_17 [0] : vector<4x256xf32> to vector<256xf32>
      %43 = vector.shape_cast %42 : vector<256xf32> to vector<1x256xf32>
      %44 = arith.subf %36, %28 : vector<1x256xf32>
      %45 = arith.divf %43, %27 : vector<1x256xf32>
      %c-100_i32 = arith.constant -100 : i32
      %46 = vector.broadcast %c-100_i32 : i32 to vector<1x256xi32>
      %47 = arith.cmpi ne, %19, %46 : vector<1x256xi32>
      %48 = arith.extui %47 : vector<1x256xi1> to vector<1x256xi32>
      %49 = arith.sitofp %48 : vector<1x256xi32> to vector<1x256xf32>
      %cst_18 = arith.constant 0.000000e+00 : f32
      %50 = vector.broadcast %cst_18 : f32 to vector<1x256xf32>
      %51 = arith.subf %50, %40 : vector<1x256xf32>
      %52 = arith.mulf %51, %44 : vector<1x256xf32>
      %cst_19 = arith.constant 1.000000e+00 : f32
      %53 = vector.broadcast %cst_19 : f32 to vector<1x256xf32>
      %54 = arith.subf %53, %45 : vector<1x256xf32>
      %cst_20 = arith.constant 0.000000e+00 : f32
      %55 = vector.broadcast %cst_20 : f32 to vector<1x256xf32>
      %56 = arith.maximumf %54, %55 : vector<1x256xf32>
      %57 = arith.mulf %56, %56 : vector<1x256xf32>
      %c0_21 = arith.constant 0 : index
      %c0_22 = arith.constant 0 : index
      %58 = vector.load %arg8[%c0_21, %c0_22] : memref<1x256xf32, #tpu.memory_space<vmem>>, vector<1x256xf32>
      %59 = arith.mulf %57, %52 : vector<1x256xf32>
      %60 = arith.mulf %59, %49 : vector<1x256xf32>
      %61 = arith.addf %58, %60 : vector<1x256xf32>
      %c0_23 = arith.constant 0 : index
      %c0_24 = arith.constant 0 : index
      %62 = vector.load %arg8[%c0_23, %c0_24] : memref<1x256xf32, #tpu.memory_space<vmem>>, vector<1x256xf32>
      tpu.vector_store %arg8[%c0_23, %c0_24], %61 {strides = array<i32>} : memref<1x256xf32, #tpu.memory_space<vmem>>, vector<1x256xf32>,
      %c0_25 = arith.constant 0 : index
      %c0_26 = arith.constant 0 : index
      %63 = vector.load %arg9[%c0_25, %c0_26] : memref<1x256xf32, #tpu.memory_space<vmem>>, vector<1x256xf32>
      %64 = arith.addf %63, %49 : vector<1x256xf32>
      %c0_27 = arith.constant 0 : index
      %c0_28 = arith.constant 0 : index
      %65 = vector.load %arg9[%c0_27, %c0_28] : memref<1x256xf32, #tpu.memory_space<vmem>>, vector<1x256xf32>
      tpu.vector_store %arg9[%c0_27, %c0_28], %64 {strides = array<i32>} : memref<1x256xf32, #tpu.memory_space<vmem>>, vector<1x256xf32>,
    } else {
    }
    %c1_i32_4 = arith.constant 1 : i32
    %11 = arith.cmpi eq, %arg1, %c1_i32_4 : i32
    %c0_i32_5 = arith.constant 0 : i32
    %12 = arith.cmpi eq, %arg2, %c0_i32_5 : i32
    %13 = arith.andi %11, %12 : i1
    %14 = arith.extui %13 : i1 to i32
    %c0_i32_6 = arith.constant 0 : i32
    %15 = arith.cmpi ne, %14, %c0_i32_6 : i32
    scf.if %15 {
      %c0 = arith.constant 0 : index
      %c0_7 = arith.constant 0 : index
      %16 = vector.load %arg8[%c0, %c0_7] : memref<1x256xf32, #tpu.memory_space<vmem>>, vector<1x256xf32>
      %17 = vector.shape_cast %16 : vector<1x256xf32> to vector<1x1x256xf32>
      %cst = arith.constant dense<0.000000e+00> : vector<1xf32>
      %18 = vector.multi_reduction <add>, %17, %cst [1, 2] : vector<1x1x256xf32> to vector<1xf32>
      %19 = vector.shape_cast %18 : vector<1xf32> to vector<1x1x1xf32>
      %20 = vector.extract %19[0, 0, 0] : f32 from vector<1x1x1xf32>
      %21 = vector.broadcast %20 : f32 to vector<1x1xf32>
      %c0_8 = arith.constant 0 : index
      %c0_9 = arith.constant 0 : index
      %22 = vector.load %arg6[%c0_8, %c0_9] : memref<1x1xf32, #tpu.memory_space<vmem>>, vector<1x1xf32>
      tpu.vector_store %arg6[%c0_8, %c0_9], %21 {strides = array<i32>} : memref<1x1xf32, #tpu.memory_space<vmem>>, vector<1x1xf32>,
      %c0_10 = arith.constant 0 : index
      %c0_11 = arith.constant 0 : index
      %23 = vector.load %arg9[%c0_10, %c0_11] : memref<1x256xf32, #tpu.memory_space<vmem>>, vector<1x256xf32>
      %24 = vector.shape_cast %23 : vector<1x256xf32> to vector<1x1x256xf32>
      %cst_12 = arith.constant dense<0.000000e+00> : vector<1xf32>
      %25 = vector.multi_reduction <add>, %24, %cst_12 [1, 2] : vector<1x1x256xf32> to vector<1xf32>
      %26 = vector.shape_cast %25 : vector<1xf32> to vector<1x1x1xf32>
      %27 = vector.extract %26[0, 0, 0] : f32 from vector<1x1x1xf32>
      %28 = vector.broadcast %27 : f32 to vector<1x1xf32>
      %c0_13 = arith.constant 0 : index
      %c0_14 = arith.constant 0 : index
      %29 = vector.load %arg7[%c0_13, %c0_14] : memref<1x1xf32, #tpu.memory_space<vmem>>, vector<1x1xf32>
      tpu.vector_store %arg7[%c0_13, %c0_14], %28 {strides = array<i32>} : memref<1x1xf32, #tpu.memory_space<vmem>>, vector<1x1xf32>,
    } else {
    }
    return
  }
  func.func @transform_0(%arg0: i32, %arg1: i32, %arg2: i32) -> (i32, i32, i32) {
    %c1_i32 = arith.constant 1 : i32
    %0 = arith.muli %arg0, %c1_i32 : i32
    %1 = arith.addi %0, %arg2 : i32
    %c0_i32 = arith.constant 0 : i32
    %c0_i32_0 = arith.constant 0 : i32
    return %arg1, %c0_i32, %1 : i32, i32, i32
  }
  func.func @transform_1(%arg0: i32, %arg1: i32, %arg2: i32) -> (i32, i32, i32) {
    %c1_i32 = arith.constant 1 : i32
    %0 = arith.muli %arg0, %c1_i32 : i32
    %1 = arith.addi %0, %arg2 : i32
    %c0_i32 = arith.constant 0 : i32
    %c0_i32_0 = arith.constant 0 : i32
    return %arg1, %c0_i32, %1 : i32, i32, i32
  }
  func.func @transform_2(%arg0: i32, %arg1: i32, %arg2: i32) -> (i32, i32) {
    %c0_i32 = arith.constant 0 : i32
    %c0_i32_0 = arith.constant 0 : i32
    %c0_i32_1 = arith.constant 0 : i32
    return %c0_i32, %c0_i32_0 : i32, i32
  }
  func.func @transform_3(%arg0: i32, %arg1: i32, %arg2: i32) -> (i32, i32) {
    %c0_i32 = arith.constant 0 : i32
    %c0_i32_0 = arith.constant 0 : i32
    return %arg0, %c0_i32 : i32, i32
  }
  func.func @transform_4(%arg0: i32, %arg1: i32, %arg2: i32) -> (i32, i32) {
    %c0_i32 = arith.constant 0 : i32
    %c0_i32_0 = arith.constant 0 : i32
    return %arg0, %c0_i32 : i32, i32
  }
}

</mosaic_0001>

<llo_original>
// kernel: tpu_custom_call.1
$region0: #{tpu_custom_call.1}
  #allocation0 [shape = 'u32[]', space=smem, size = 0x4, offset = 0x4, fixed_abs, tag = 'smem constant byte address 0x4 - core index']
  #allocation1 [shape = 'u32[144,128]{1,0:T(1,128)}', space=vmem, size = 0x12000, scoped, tag = 'internal scratch']
  #allocation2 [shape = 'f32[1,256]{1,0:T(1,128)}', space=vmem, size = 0x400, scoped, tag = 'scratch operand']
  #allocation3 [shape = 'f32[1,256]{1,0:T(1,128)}', space=vmem, size = 0x400, scoped, tag = 'scratch operand']
  %s0 = inlined_call_operand.hbm [shape: f32[2,4,256], index: 0, kind: input, shape index: {}]
  %s1 = inlined_call_operand.hbm [shape: s32[2,1,256], index: 1, kind: input, shape index: {}]
  %s2 = inlined_call_operand.hbm [shape: f32[4,1], index: 2, kind: input, shape index: {}]
  %s3 = inlined_call_operand.hbm [shape: f32[1,1], index: 3, kind: output, shape index: {0}]
  %s4 = inlined_call_operand.hbm [shape: f32[1,1], index: 4, kind: output, shape index: {1}]
  %5 = xla_tuple %s3, %s4
  %s6 = sld [smem:[#allocation0]]
  $region77: #{tpu_custom_call.1} parent=0
    _
  %s8 = ssub.s32 1, %s6
  %s9 = scalar_select 0, %s8, %s6
  $region1: #{tpu_custom_call.1} parent=0
    #allocation4 [shape = 'u8[8192]{0}', space=vmem, size = 0x2000, scoped, tag = 'input window, operand 0']
    #allocation5 [shape = 's32[2]{0}', space=sflag, size = 0x8, scoped, tag = 'scoped memory for tpu_custom_call.1']
    #allocation6 [shape = 's32[2]{0}', space=sflag, size = 0x8, scoped, tag = 'scoped memory for tpu_custom_call.1']
    #allocation7 [shape = 'u8[2048]{0}', space=vmem, size = 0x800, scoped, tag = 'input window, operand 1']
    #allocation8 [shape = 's32[2]{0}', space=sflag, size = 0x8, scoped, tag = 'scoped memory for tpu_custom_call.1']
    #allocation9 [shape = 'u8[2048]{0}', space=vmem, size = 0x800, scoped, tag = 'input window, operand 2, single buffered']
    #allocation10 [shape = 'u8[512]{0}', space=vmem, size = 0x400, scoped, tag = 'output window, operand 0, single buffered']
    #allocation11 [shape = 'u8[512]{0}', space=vmem, size = 0x400, scoped, tag = 'output window, operand 1, single buffered']
    #allocation12 [shape = 's32[1]{0}', space=sflag, size = 0x4, scoped, tag = 'scoped memory for tpu_custom_call.1']
    %10 = vsyncpa [#allocation5], 0
    %s11 = scalar_lea.sflag [#allocation5], 1
    %12 = vsyncpa %s11, 0
    %13 = vsyncpa [#allocation8], 0
    %s14 = scalar_lea.sflag [#allocation8], 1
    %15 = vsyncpa %s14, 0
    %16 = vsyncpa [#allocation6], 0
    %17 = vsyncpa [#allocation12], 0
    loop: start=0, step=1, limit=4
    $region2: #{tpu_custom_call.1} parent=1 // loop_pre_header
      _
    $region3: #{tpu_custom_call.1} parent=1 // loop_header
      %s19 = sphi 0, %s23
      %p20 = scmp.ge.s32.totalorder %s19, 4
      %s26 = sphi 0, %s45
      %s27 = sphi 0, %s41
      %s28 = sphi 0, %s37
      %s29 = sphi 0, %s26
      %s30 = sphi 0, %s27
      %s31 = sphi 0, %s28
      %s32 = sphi 0, %s29
      %s33 = sphi 0, %s30
      %s34 = sphi 0, %s31
      %s52 = sphi 0, %s54
      %s55 = sphi 0, %s52
      %s56 = sphi 0, %s55
      %s72 = sphi 0, %s56
      %s82 = sphi 0, %s84
      %s85 = sphi 0, %s82
      %s86 = sphi 0, %s85
      %s102 = sphi 0, %s86
      %s106 = sphi 0, %s106
      %s108 = sphi 0, %s106
      %s109 = sphi 0, %s108
      %s123 = sphi 0, %s109
      %s129 = sphi 0, %s131
      %s132 = sphi 0, %s129
      %s133 = sphi 0, %s132
      %s149 = sphi 0, %s133
      %s155 = sphi 0, %s157
      %s158 = sphi 0, %s155
      %s159 = sphi 0, %s158
      %s175 = sphi 0, %s159
    $region4: #{tpu_custom_call.1} parent=1 // loop_header_branch
      %22 = sbr.rel (%p20) target = $region8
    $region5: #{tpu_custom_call.1} parent=1 // loop_body
      %s24 = ssub.s32 %s19, 1
      %s25 = ssub.s32 %s19, 2
      %s35 = sadd.s32 1, %s28
      %p36 = scmp.ge.s32.totalorder %s35, 1
      %s37 = scalar_select %p36, 0, %s35
      %s38 = sadd.s32 1, %s27
      %s39 = scalar_select %p36, %s38, %s27
      %p40 = scmp.ge.s32.totalorder %s39, 2
      %s41 = scalar_select %p40, 0, %s39
      %s42 = sadd.s32 1, %s26
      %s43 = scalar_select %p40, %s42, %s26
      %p44 = scmp.ge.s32.totalorder %s43, 1
      %s45 = scalar_select %p44, 0, %s43
      %s46 = sadd.s32 %s26, %s28
      %s47 = sadd.s32 %s45, %s37
      %s48 = ssub.s32 %s27, %s41
      %s49 = ssub.s32 %s46, %s47
      %s50 = sor.u32 %s48, %s49
      %p51 = scmp.eq.s32.totalorder %s50, 0
      %s53 = sadd.s32 %s52, 1
      %s54 = scalar_select %p51, %s52, %s53
      %p57 = pneg %p51
      %p58 = scmp.eq.s32.totalorder %s19, 1
      %p59 = por %p57, %p58
      %p60 = scmp.ne.s32.totalorder %s52, %s55
      %p61 = scmp.eq.s32.totalorder %s19, 0
      %p62 = por %p60, %p61
      %p63 = scmp.ne.s32.totalorder %s52, %s55
      %p64 = scmp.eq.s32.totalorder %s24, 1
      %p65 = por %p63, %p64
      %p66 = scmp.ne.s32.totalorder %s55, %s56
      %p67 = scmp.eq.s32.totalorder %s24, 0
      %p68 = por %p66, %p67
      %p69 = scmp.ne.s32.totalorder %s55, %s56
      %p70 = scmp.eq.s32.totalorder %s25, 1
      %p71 = por %p69, %p70
      %p73 = scmp.ne.s32.totalorder %s56, %s72
      %p74 = scmp.eq.s32.totalorder %s25, 0
      %p75 = por %p73, %p74
      %s76 = sadd.s32 %s26, %s28
      %s77 = sadd.s32 %s45, %s37
      %s78 = ssub.s32 %s27, %s41
      %s79 = ssub.s32 %s76, %s77
      %s80 = sor.u32 %s78, %s79
      %p81 = scmp.eq.s32.totalorder %s80, 0
      %s83 = sadd.s32 %s82, 1
      %s84 = scalar_select %p81, %s82, %s83
      %p87 = pneg %p81
      %p88 = scmp.eq.s32.totalorder %s19, 1
      %p89 = por %p87, %p88
      %p90 = scmp.ne.s32.totalorder %s82, %s85
      %p91 = scmp.eq.s32.totalorder %s19, 0
      %p92 = por %p90, %p91
      %p93 = scmp.ne.s32.totalorder %s82, %s85
      %p94 = scmp.eq.s32.totalorder %s24, 1
      %p95 = por %p93, %p94
      %p96 = scmp.ne.s32.totalorder %s85, %s86
      %p97 = scmp.eq.s32.totalorder %s24, 0
      %p98 = por %p96, %p97
      %p99 = scmp.ne.s32.totalorder %s85, %s86
      %p100 = scmp.eq.s32.totalorder %s25, 1
      %p101 = por %p99, %p100
      %p103 = scmp.ne.s32.totalorder %s86, %s102
      %p104 = scmp.eq.s32.totalorder %s25, 0
      %p105 = por %p103, %p104
      %s107 = sadd.s32 %s106, 1
      %p110 = scmp.eq.s32.totalorder %s19, 1
      %p111 = scmp.ne.s32.totalorder %s106, %s108
      %p112 = scmp.eq.s32.totalorder %s19, 0
      %p113 = por %p111, %p112
      %p114 = scmp.ne.s32.totalorder %s106, %s108
      %p115 = scmp.eq.s32.totalorder %s24, 1
      %p116 = por %p114, %p115
      %p117 = scmp.ne.s32.totalorder %s108, %s109
      %p118 = scmp.eq.s32.totalorder %s24, 0
      %p119 = por %p117, %p118
      %p120 = scmp.ne.s32.totalorder %s108, %s109
      %p121 = scmp.eq.s32.totalorder %s25, 1
      %p122 = por %p120, %p121
      %p124 = scmp.ne.s32.totalorder %s109, %s123
      %p125 = scmp.eq.s32.totalorder %s25, 0
      %p126 = por %p124, %p125
      %s127 = ssub.s32 %s26, %s45
      %p128 = scmp.eq.s32.totalorder %s127, 0
      %s130 = sadd.s32 %s129, 1
      %s131 = scalar_select %p128, %s129, %s130
      %p134 = pneg %p128
      %p135 = scmp.eq.s32.totalorder %s19, 1
      %p136 = por %p134, %p135
      %p137 = scmp.ne.s32.totalorder %s129, %s132
      %p138 = scmp.eq.s32.totalorder %s19, 0
      %p139 = por %p137, %p138
      %p140 = scmp.ne.s32.totalorder %s129, %s132
      %p141 = scmp.eq.s32.totalorder %s24, 1
      %p142 = por %p140, %p141
      %p143 = scmp.ne.s32.totalorder %s132, %s133
      %p144 = scmp.eq.s32.totalorder %s24, 0
      %p145 = por %p143, %p144
      %p146 = scmp.ne.s32.totalorder %s132, %s133
      %p147 = scmp.eq.s32.totalorder %s25, 1
      %p148 = por %p146, %p147
      %p150 = scmp.ne.s32.totalorder %s133, %s149
      %p151 = scmp.eq.s32.totalorder %s25, 0
      %p152 = por %p150, %p151
      %s153 = ssub.s32 %s26, %s45
      %p154 = scmp.eq.s32.totalorder %s153, 0
      %s156 = sadd.s32 %s155, 1
      %s157 = scalar_select %p154, %s155, %s156
      %p160 = pneg %p154
      %p161 = scmp.eq.s32.totalorder %s19, 1
      %p162 = por %p160, %p161
      %p163 = scmp.ne.s32.totalorder %s155, %s158
      %p164 = scmp.eq.s32.totalorder %s19, 0
      %p165 = por %p163, %p164
      %p166 = scmp.ne.s32.totalorder %s155, %s158
      %p167 = scmp.eq.s32.totalorder %s24, 1
      %p168 = por %p166, %p167
      %p169 = scmp.ne.s32.totalorder %s158, %s159
      %p170 = scmp.eq.s32.totalorder %s24, 0
      %p171 = por %p169, %p170
      %p172 = scmp.ne.s32.totalorder %s158, %s159
      %p173 = scmp.eq.s32.totalorder %s25, 1
      %p174 = por %p172, %p173
      %p176 = scmp.ne.s32.totalorder %s159, %s175
      %p177 = scmp.eq.s32.totalorder %s25, 0
      %p178 = por %p176, %p177
      %p179 = scmp.le.s32.totalorder 1, %s19
      %p180 = scmp.lt.s32.totalorder %s19, 3
      %p181 = pnand %p179, %p180
      %p182 = pneg %p181
      // Predicated region
      $region9: #{tpu_custom_call.1} parent=5 // pred_check
        _
      $region10: #{tpu_custom_call.1} parent=5 // pred_check_branch
        %184 = sbr.rel (%p181) target = $region12
      $region11: #{tpu_custom_call.1} parent=5 // pred_region
        %s185 = ssub.s32 %s19, 1
        // Predicated region
        $region13: #{tpu_custom_call.1} parent=11 // pred_check
          %p186 = pneg %p119
        $region14: #{tpu_custom_call.1} parent=11 // pred_check_branch
          %188 = sbr.rel (%p186) target = $region16
        $region15: #{tpu_custom_call.1} parent=11 // pred_region
          %s190 = ssub.s32 64, 64
          %191 = vsyncadd [#allocation8], %s190
          %s193 = sshll.u32 [#allocation9], 4
          %s194 = int_to_ptr.vmem [resolvable:$true] %s193
          %196 = dma.hbm_to_vmem [thread:$0]  %s2, 64, %s194, [#allocation8]
        $region16: #{tpu_custom_call.1} parent=11 // pred_fallthru
          _
      $region12: #{tpu_custom_call.1} parent=5 // pred_fallthru
        _
      %p197 = scmp.lt.s32.totalorder %s19, 2
      // Predicated region
      $region17: #{tpu_custom_call.1} parent=5 // pred_check
        %p198 = pneg %p197
      $region18: #{tpu_custom_call.1} parent=5 // pred_check_branch
        %200 = sbr.rel (%p198) target = $region20
      $region19: #{tpu_custom_call.1} parent=5 // pred_region
        // Predicated region
        $region21: #{tpu_custom_call.1} parent=19 // pred_check
          %p201 = pneg %p62
        $region22: #{tpu_custom_call.1} parent=19 // pred_check_branch
          %203 = sbr.rel (%p201) target = $region24
        $region23: #{tpu_custom_call.1} parent=19 // pred_region
          %s204 = sand.u32 %s52, 1
          %s205 = scalar_lea.sflag [#allocation5], %s204
          %s206 = sand.u32 %s52, 1
          %s207 = smul.addr %s206, 8
          %s208 = scalar_lea.vmem [#allocation4], %s207
          %s209 = sadd.s32 %s26, %s28
          %s210 = smul.u32 2, %s209
          %s212 = ssub.s32 128, 128
          %213 = vsyncadd %s205, %s212
          %s214 = smul.addr %s27, 2
          %s215 = sadd.s32 %s210, %s214
          %s216 = smul.addr %s215, 64
          %s217 = scalar_lea.hbm %s0, %s216
          %s219 = sshll.u32 %s208, 4
          %s220 = int_to_ptr.vmem [resolvable:$true] %s219
          %222 = dma.hbm_to_vmem [thread:$0]  %s217, 128, %s220, %s205
        $region24: #{tpu_custom_call.1} parent=19 // pred_fallthru
          _
        // Predicated region
        $region25: #{tpu_custom_call.1} parent=19 // pred_check
          %p223 = pneg %p92
        $region26: #{tpu_custom_call.1} parent=19 // pred_check_branch
          %225 = sbr.rel (%p223) target = $region28
        $region27: #{tpu_custom_call.1} parent=19 // pred_region
          %s226 = sand.u32 %s19, 1
          %s227 = scalar_lea.sflag [#allocation8], %s226
          %s228 = sand.u32 %s82, 1
          %s229 = smul.addr %s228, 2
          %s230 = scalar_lea.vmem [#allocation7], %s229
          %s231 = sadd.s32 %s26, %s28
          %s232 = smul.u32 2, %s231
          %s234 = ssub.s32 32, 32
          %235 = vsyncadd %s227, %s234
          %s236 = smul.addr %s27, 2
          %s237 = sadd.s32 %s232, %s236
          %s238 = smul.addr %s237, 16
          %s239 = scalar_lea.hbm %s1, %s238
          %s241 = sshll.u32 %s230, 4
          %s242 = int_to_ptr.vmem [resolvable:$true] %s241
          %244 = dma.hbm_to_vmem [thread:$0]  %s239, 32, %s242, %s227
        $region28: #{tpu_custom_call.1} parent=19 // pred_fallthru
          _
      $region20: #{tpu_custom_call.1} parent=5 // pred_fallthru
        _
      %p245 = scmp.le.s32.totalorder 1, %s19
      %p246 = scmp.lt.s32.totalorder %s19, 3
      %p247 = pnand %p245, %p246
      %p248 = pneg %p247
      // Predicated region
      $region29: #{tpu_custom_call.1} parent=5 // pred_check
        _
      $region30: #{tpu_custom_call.1} parent=5 // pred_check_branch
        %250 = sbr.rel (%p247) target = $region32
      $region31: #{tpu_custom_call.1} parent=5 // pred_region
        %s251 = ssub.s32 %s19, 1
        %s252 = sand.u32 %s55, 1
        %s253 = scalar_lea.sflag [#allocation5], %s252
        %s254 = sand.u32 %s55, 1
        %s255 = smul.addr %s254, 8
        %s256 = scalar_lea.vmem [#allocation4], %s255
        // Predicated region
        $region33: #{tpu_custom_call.1} parent=31 // pred_check
          %p257 = pneg %p68
        $region34: #{tpu_custom_call.1} parent=31 // pred_check_branch
          %259 = sbr.rel (%p257) target = $region36
        $region35: #{tpu_custom_call.1} parent=31 // pred_region
          %260 = dma.done %s253, 128
        $region36: #{tpu_custom_call.1} parent=31 // pred_fallthru
          _
        %s261 = sand.u32 %s24, 1
        %s262 = scalar_lea.sflag [#allocation8], %s261
        %s263 = sand.u32 %s85, 1
        %s264 = smul.addr %s263, 2
        %s265 = scalar_lea.vmem [#allocation7], %s264
        // Predicated region
        $region37: #{tpu_custom_call.1} parent=31 // pred_check
          %p266 = pneg %p98
        $region38: #{tpu_custom_call.1} parent=31 // pred_check_branch
          %268 = sbr.rel (%p266) target = $region40
        $region39: #{tpu_custom_call.1} parent=31 // pred_region
          %269 = dma.done %s262, 32
        $region40: #{tpu_custom_call.1} parent=31 // pred_fallthru
          _
        // Predicated region
        $region41: #{tpu_custom_call.1} parent=31 // pred_check
          %p270 = pneg %p119
        $region42: #{tpu_custom_call.1} parent=31 // pred_check_branch
          %272 = sbr.rel (%p270) target = $region44
        $region43: #{tpu_custom_call.1} parent=31 // pred_region
          %273 = dma.done [#allocation8], 64
        $region44: #{tpu_custom_call.1} parent=31 // pred_fallthru
          _
        %s274 = sand.u32 %s55, 1
        %s275 = scalar_lea.sflag [#allocation5], %s274
        %s276 = sand.u32 %s55, 1
        %s277 = smul.addr %s276, 8
        %s278 = scalar_lea.vmem [#allocation4], %s277
        %p279 = pneg %p68
        %p280 = pneg %p65
        %s281 = sand.u32 %s24, 1
        %s282 = scalar_lea.sflag [#allocation8], %s281
        %s283 = sand.u32 %s85, 1
        %s284 = smul.addr %s283, 2
        %s285 = scalar_lea.vmem [#allocation7], %s284
        %p286 = pneg %p98
        %p287 = pneg %p95
        %p288 = pneg %p119
        %p289 = pneg %p116
        %p290 = pneg %p145
        %p291 = pneg %p142
        %p292 = pneg %p171
        %p293 = pneg %p168
        %s294 = sadd.s32 %s29, %s31
        %s295 = smul.u32 2, %s294
        %s296 = sadd.s32 %s29, %s31
        %s297 = smul.u32 2, %s296
        %p298 = scmp.eq.s32.totalorder %s30, 0
        %p299 = scmp.eq.s32.totalorder %s31, 0
        %p300 = pnand %p298, %p299
        %p301 = pneg %p300
        // Predicated region
        $region45: #{tpu_custom_call.1} parent=31 // pred_check
          _
        $region46: #{tpu_custom_call.1} parent=31 // pred_check_branch
          %303 = sbr.rel (%p300) target = $region48
        $region47: #{tpu_custom_call.1} parent=31 // pred_region
          %v304 = vlaneseq
          %vm305 = vcmp.ge.s32.totalorder %v304, 0
          %vm306 = vcmp.lt.s32.totalorder %v304, 256
          %vm307 = vmand %vm305, %vm306
          %308 = vst.msk [vmem:[#allocation2] sm:$0x3] %vm307, 0.0
          %309 = vst.msk [vmem:[#allocation3] sm:$0x3] %vm307, 0.0
        $region48: #{tpu_custom_call.1} parent=31 // pred_fallthru
          _
        %s310 = sadd.s32 %s29, %s31
        %s311 = smul.u32 %s310, 256
        %p312 = scmp.lt.s32.totalorder %s311, 256
        // Predicated region
        $region49: #{tpu_custom_call.1} parent=31 // pred_check
          %p313 = pneg %p312
        $region50: #{tpu_custom_call.1} parent=31 // pred_check_branch
          %315 = sbr.rel (%p313) target = $region52
        $region51: #{tpu_custom_call.1} parent=31 // pred_region
          %v316 = vld [vmem:[%s256] sm:$0xff]
          %v317 = vld [vmem:[%s265] sm:$0x3]
          %v318 = vld [vmem:[#allocation9] sm:$0xf]
          %v320 = vcombine.high %v316, %v316
          %vm322 = vcmask 1043456
          %v323 = vsel %vm322, %v316, -inf
          %v324 = vrot.slane %v323, 4
          %v325 = vmax.f32 %v323, %v324
          %v326 = vrot.slane %v325, 2
          %v327 = vmax.f32 %v325, %v326
          %v328 = vrot.slane %v327, 1
          %v329 = vmax.f32 %v327, %v328
          %v330 = vsel %vm322, %v320, -inf
          %v331 = vrot.slane %v330, 4
          %v332 = vmax.f32 %v330, %v331
          %v333 = vrot.slane %v332, 2
          %v334 = vmax.f32 %v332, %v333
          %v335 = vrot.slane %v334, 1
          %v336 = vmax.f32 %v334, %v335
          %v339 = vcombine.low %v329, %v336
          %v341 = vsub.f32 %v316, %v339
          %v342 = vmul.f32 %v341, 1.442695
          %v343 = vpow.pop %v342
          %v345 = vcombine.high %v343, %v343
          %v347 = vsel %vm322, %v343, 0.0
          %v348 = vrot.slane %v347, 4
          %v349 = vadd.f32 %v347, %v348
          %v350 = vrot.slane %v349, 2
          %v351 = vadd.f32 %v349, %v350
          %v352 = vrot.slane %v351, 1
          %v353 = vadd.f32 %v351, %v352
          %v354 = vsel %vm322, %v345, 0.0
          %v355 = vrot.slane %v354, 4
          %v356 = vadd.f32 %v354, %v355
          %v357 = vrot.slane %v356, 2
          %v358 = vadd.f32 %v356, %v357
          %v359 = vrot.slane %v358, 1
          %v360 = vadd.f32 %v358, %v359
          %v361 = vlog2.pop %v353
          %v362 = vmul.f32 %v361, 0.6931472
          %v363 = vlog2.pop %v360
          %v364 = vmul.f32 %v363, 0.6931472
          %v365 = vlaneseq
          %v366 = vshrl.u32 %v365, 7
          %v367 = vlaneseq
          %v368 = vshrl.u32 %v367, 7
          %v369 = vsub.s32 0, %v368
          %v370 = vrot.slane %v317, %v369
          %v371 = vlaneseq
          %v372 = vshrl.u32 %v371, 7
          %v373 = vsub.s32 1, %v372
          %v374 = vrot.slane %v317, %v373
          %vm375 = vcmp.eq.s32.totalorder %v366, %v370
          %vm376 = vcmp.eq.s32.totalorder %v366, %v374
          %v377 = vsel %vm375, 1, 0
          %v378 = vsel %vm376, 1, 0
          %v379 = vcvt.s32.f32 %v377
          %v380 = vcvt.s32.f32 %v378
          %v383 = vcombine.low %v379, %v380
          %v385 = vmul.f32 %v341, %v383
          %v387 = vcombine.high %v385, %v385
          %v389 = vsel %vm322, %v385, 0.0
          %v390 = vrot.slane %v389, 4
          %v391 = vadd.f32 %v389, %v390
          %v392 = vrot.slane %v391, 2
          %v393 = vadd.f32 %v391, %v392
          %v394 = vrot.slane %v393, 1
          %v395 = vadd.f32 %v393, %v394
          %v396 = vsel %vm322, %v387, 0.0
          %v397 = vrot.slane %v396, 4
          %v398 = vadd.f32 %v396, %v397
          %v399 = vrot.slane %v398, 2
          %v400 = vadd.f32 %v398, %v399
          %v401 = vrot.slane %v400, 1
          %v402 = vadd.f32 %v400, %v401
          %404 = vset.pattern.permute.xlu0 0
          %405 = vperm.xlu0 %404, %v318
          %v406 = vpop.permute.xlu0 %405
          %v408 = vmul.f32 %v406, %v379
          %v409 = vmul.f32 %v406, %v380
          %v410 = vsel %vm322, %v408, 0.0
          %v411 = vrot.slane %v410, 4
          %v412 = vadd.f32 %v410, %v411
          %v413 = vrot.slane %v412, 2
          %v414 = vadd.f32 %v412, %v413
          %v415 = vrot.slane %v414, 1
          %v416 = vadd.f32 %v414, %v415
          %v417 = vsel %vm322, %v409, 0.0
          %v418 = vrot.slane %v417, 4
          %v419 = vadd.f32 %v417, %v418
          %v420 = vrot.slane %v419, 2
          %v421 = vadd.f32 %v419, %v420
          %v422 = vrot.slane %v421, 1
          %v423 = vadd.f32 %v421, %v422
          %v424 = vmul.f32 %v343, %v383
          %v426 = vcombine.high %v424, %v424
          %v428 = vsel %vm322, %v424, 0.0
          %v429 = vrot.slane %v428, 4
          %v430 = vadd.f32 %v428, %v429
          %v431 = vrot.slane %v430, 2
          %v432 = vadd.f32 %v430, %v431
          %v433 = vrot.slane %v432, 1
          %v434 = vadd.f32 %v432, %v433
          %v435 = vsel %vm322, %v426, 0.0
          %v436 = vrot.slane %v435, 4
          %v437 = vadd.f32 %v435, %v436
          %v438 = vrot.slane %v437, 2
          %v439 = vadd.f32 %v437, %v438
          %v440 = vrot.slane %v439, 1
          %v441 = vadd.f32 %v439, %v440
          %v442 = vsub.f32 %v395, %v362
          %v443 = vsub.f32 %v402, %v364
          %v444 = vrcp.pop %v353
          %v445 = vmul.f32 %v434, %v444
          %v446 = vrcp.pop %v360
          %v447 = vmul.f32 %v441, %v446
          %vm448 = vcmp.ne.s32.totalorder %v317, 4294967196
          %v449 = vsel %vm448, 1, 0
          %v450 = vcvt.s32.f32 %v449
          %v451 = vsub.f32 0.0, %v416
          %v452 = vsub.f32 0.0, %v423
          %v453 = vmul.f32 %v451, %v442
          %v454 = vmul.f32 %v452, %v443
          %v455 = vsub.f32 1.0, %v445
          %v456 = vsub.f32 1.0, %v447
          %v457 = vmax.f32 %v455, 0.0
          %v458 = vmax.f32 %v456, 0.0
          %v459 = vmul.f32 %v457, %v457
          %v460 = vmul.f32 %v458, %v458
          %v461 = vld [vmem:[#allocation2] sm:$0x3]
          %v462 = vmul.f32 %v459, %v453
          %v463 = vmul.f32 %v460, %v454
          %v465 = vlaneseq
          %v466 = vshrl.u32 %v465, 7
          %v467 = vsub.s32 0, %v466
          %v468 = vrot.slane %v450, %v467
          %v469 = vlaneseq
          %v470 = vshrl.u32 %v469, 7
          %v471 = vsub.s32 1, %v470
          %v472 = vrot.slane %v450, %v471
          %v475 = vmul.f32 %v462, %v468
          %v476 = vmul.f32 %v463, %v472
          %v479 = vcombine.low %v475, %v476
          %v481 = vunpack.c.l.s4 1966171168
          %v482 = vunpack.c.0.s8 %v481
          %v483 = vlaneseq
          %v484 = vshrl.u32 %v483, 7
          %v485 = vsub.s32 %v482, %v484
          %v486 = vrot.slane %v479, %v485
          %v488 = vunpack.c.l.s4 1966171168
          %v489 = vunpack.c.0.s8 %v488
          %v490 = vlaneseq
          %v491 = vshrl.u32 %v490, 7
          %v492 = vsub.s32 %v489, %v491
          %v493 = vrot.slane %v486, %v492
          %v495 = vadd.f32 %v461, %v493
          %v496 = vlaneseq
          %vm497 = vcmp.ge.s32.totalorder %v496, 0
          %vm498 = vcmp.lt.s32.totalorder %v496, 256
          %vm499 = vmand %vm497, %vm498
          %500 = vst.msk [vmem:[#allocation2] sm:$0x3] %vm499, %v495
          %v501 = vld [vmem:[#allocation3] sm:$0x3]
          %v502 = vadd.f32 %v501, %v450
          %503 = vst.msk [vmem:[#allocation3] sm:$0x3] %vm499, %v502
        $region52: #{tpu_custom_call.1} parent=31 // pred_fallthru
          _
        %p504 = scmp.eq.s32.totalorder %s30, 1
        %p505 = pnand %p504, %p299
        %p506 = pneg %p505
        // Predicated region
        $region53: #{tpu_custom_call.1} parent=31 // pred_check
          _
        $region54: #{tpu_custom_call.1} parent=31 // pred_check_branch
          %508 = sbr.rel (%p505) target = $region56
        $region55: #{tpu_custom_call.1} parent=31 // pred_region
          %v509 = vld [vmem:[#allocation2] sm:$0x3]
          %v511 = vlaneseq
          %v512 = vshrl.u32 %v511, 7
          %v513 = vsub.s32 0, %v512
          %v514 = vrot.slane %v509, %v513
          %v515 = vlaneseq
          %v516 = vshrl.u32 %v515, 7
          %v517 = vsub.s32 1, %v516
          %v518 = vrot.slane %v509, %v517
          %vm521 = vcmask 1040384
          %v522 = vsel %vm521, %v514, 0.0
          %v523 = vsel %vm521, %v518, 0.0
          %v524 = vadd.f32 %v522, %v523
          %525 = vadd.xlane.f32.xlu0 %v524
          %v526 = vpop.xlane.xlu0 %525
          %v527 = vrot.slane %v526, 4
          %v528 = vadd.f32 %v526, %v527
          %v529 = vrot.slane %v528, 2
          %v530 = vadd.f32 %v528, %v529
          %v531 = vrot.slane %v530, 1
          %v532 = vadd.f32 %v530, %v531
          %s533 = vtos %v532
          %v534 = vstv %s533
          %vm535 = vcmask 0
          %536 = vst.msk [vmem:[#allocation10] sm:$0x1] %vm535, %v534
          %v537 = vld [vmem:[#allocation3] sm:$0x3]
          %v539 = vlaneseq
          %v540 = vshrl.u32 %v539, 7
          %v541 = vsub.s32 0, %v540
          %v542 = vrot.slane %v537, %v541
          %v543 = vlaneseq
          %v544 = vshrl.u32 %v543, 7
          %v545 = vsub.s32 1, %v544
          %v546 = vrot.slane %v537, %v545
          %v549 = vsel %vm521, %v542, 0.0
          %v550 = vsel %vm521, %v546, 0.0
          %v551 = vadd.f32 %v549, %v550
          %552 = vadd.xlane.f32.xlu0 %v551
          %v553 = vpop.xlane.xlu0 %552
          %v554 = vrot.slane %v553, 4
          %v555 = vadd.f32 %v553, %v554
          %v556 = vrot.slane %v555, 2
          %v557 = vadd.f32 %v555, %v556
          %v558 = vrot.slane %v557, 1
          %v559 = vadd.f32 %v557, %v558
          %s560 = vtos %v559
          %v561 = vstv %s560
          %562 = vst.msk [vmem:[#allocation11] sm:$0x1] %vm535, %v561
        $region56: #{tpu_custom_call.1} parent=31 // pred_fallthru
          _
        // Predicated region
        $region57: #{tpu_custom_call.1} parent=31 // pred_check
          %p563 = pneg %p142
        $region58: #{tpu_custom_call.1} parent=31 // pred_check_branch
          %565 = sbr.rel (%p563) target = $region60
        $region59: #{tpu_custom_call.1} parent=31 // pred_region
          %s567 = ssub.s32 16, 16
          %568 = vsyncadd [#allocation6], %s567
          %s569 = smul.addr %s29, 16
          %s570 = scalar_lea.hbm %s3, %s569
          %s572 = sshll.u32 [#allocation10], 4
          %s573 = int_to_ptr.vmem [resolvable:$true] %s572
          %575 = dma.vmem_to_hbm [thread:$0]  %s573, 16, %s570, [#allocation6]
        $region60: #{tpu_custom_call.1} parent=31 // pred_fallthru
          _
        // Predicated region
        $region61: #{tpu_custom_call.1} parent=31 // pred_check
          %p576 = pneg %p168
        $region62: #{tpu_custom_call.1} parent=31 // pred_check_branch
          %578 = sbr.rel (%p576) target = $region64
        $region63: #{tpu_custom_call.1} parent=31 // pred_region
          %s580 = ssub.s32 16, 16
          %581 = vsyncadd [#allocation12], %s580
          %s582 = smul.addr %s29, 16
          %s583 = scalar_lea.hbm %s4, %s582
          %s585 = sshll.u32 [#allocation11], 4
          %s586 = int_to_ptr.vmem [resolvable:$true] %s585
          %588 = dma.vmem_to_hbm [thread:$0]  %s586, 16, %s583, [#allocation12]
        $region64: #{tpu_custom_call.1} parent=31 // pred_fallthru
          _
        // Predicated region
        $region65: #{tpu_custom_call.1} parent=31 // pred_check
          %p589 = pneg %p142
        $region66: #{tpu_custom_call.1} parent=31 // pred_check_branch
          %591 = sbr.rel (%p589) target = $region68
        $region67: #{tpu_custom_call.1} parent=31 // pred_region
          %592 = dma.done [#allocation6], 16
        $region68: #{tpu_custom_call.1} parent=31 // pred_fallthru
          _
        // Predicated region
        $region69: #{tpu_custom_call.1} parent=31 // pred_check
          %p593 = pneg %p168
        $region70: #{tpu_custom_call.1} parent=31 // pred_check_branch
          %595 = sbr.rel (%p593) target = $region72
        $region71: #{tpu_custom_call.1} parent=31 // pred_region
          %596 = dma.done [#allocation12], 16
        $region72: #{tpu_custom_call.1} parent=31 // pred_fallthru
          _
      $region32: #{tpu_custom_call.1} parent=5 // pred_fallthru
        _
      %p597 = scmp.le.s32.totalorder 2, %s19
      // Predicated region
      $region73: #{tpu_custom_call.1} parent=5 // pred_check
        %p598 = pneg %p597
      $region74: #{tpu_custom_call.1} parent=5 // pred_check_branch
        %600 = sbr.rel (%p598) target = $region76
      $region75: #{tpu_custom_call.1} parent=5 // pred_region
        %s601 = ssub.s32 %s19, 2
      $region76: #{tpu_custom_call.1} parent=5 // pred_fallthru
        _
    $region6: #{tpu_custom_call.1} parent=1 // loop_footer
      %s23 = sadd.s32 1, %s19
    $region7: #{tpu_custom_call.1} parent=1 // loop_footer_branch
      %18 = sbr.rel target = $region3
    $region8: #{tpu_custom_call.1} parent=1 // loop_exit
      _
    %602 = vsyncpa [#allocation5], 1
    %s603 = scalar_lea.sflag [#allocation5], 1
    %604 = vsyncpa %s603, 1
    %605 = vsyncpa [#allocation8], 1
    %s606 = scalar_lea.sflag [#allocation8], 1
    %607 = vsyncpa %s606, 1
    %608 = vsyncpa [#allocation6], 1
    %s609 = scalar_lea.sflag [#allocation6], 1
    %610 = vsyncpa %s609, 1
    %611 = vsyncpa [#allocation12], 1

</llo_original>
